<compile_context>
chip_gen: v6e
topology: v6e:2x2x1
jax: 0.10.0
libtpu: 0.0.40
codegen_flags: <defaults>
</compile_context>

<pallas_src>
import jax
import jax.numpy as jnp
from jax.experimental import pallas as pl
from jax.experimental.pallas import tpu as pltpu


def _round_up(x, m):
    return (x + m - 1) // m * m


def maxout_kernel(x_ref, w_ref, b_ref, o_ref, acc_ref):
    """One (row-tile, col-tile, pool-step) grid point.

    x_ref   : (tile_rows, d_in)
    w_ref   : (d_in, tile_cols)      weights of pool slice p for this col tile
    b_ref   : (1, tile_cols)
    o_ref   : (tile_rows, tile_cols)
    acc_ref : VMEM f32 (tile_rows, tile_cols) running max across pool steps
    """
    p = pl.program_id(2)

    y = jnp.dot(x_ref[...], w_ref[...], preferred_element_type=jnp.float32)
    y = y + b_ref[...].astype(jnp.float32)

    @pl.when(p == 0)
    def _():
        acc_ref[...] = y

    @pl.when(p > 0)
    def _():
        acc_ref[...] = jnp.maximum(acc_ref[...], y)

    @pl.when(p == pl.num_programs(2) - 1)
    def _():
        o_ref[...] = acc_ref[...].astype(o_ref.dtype)


def prepare_maxout_params(weight, bias, d_out, pool_size, *, compute_dtype=None):
    """One-time (init-time) reorder of the PyTorch parameters.

    weight: (d_out*pool_size, d_in), bias: (d_out*pool_size,)   [PyTorch layout,
    linear output column c = j*pool_size + p].

    Returns:
      w3: (pool_size, d_in, d_out_padded)  with w3[p, :, j] = weight[j*pool_size+p, :]
      b3: (pool_size, 1, d_out_padded)
      d_out_padded: d_out rounded up to a multiple of 128 (lane-dense output).
    Padded columns have zero weight/bias and are trimmed by maxout().
    """
    d_in = weight.shape[1]
    d_out_padded = _round_up(d_out, 128)

    w3 = weight.reshape(d_out, pool_size, d_in).transpose(1, 2, 0)  # (p, d_in, d_out)
    b3 = bias.reshape(d_out, pool_size).T.reshape(pool_size, 1, d_out)

    pad = d_out_padded - d_out
    if pad:
        w3 = jnp.pad(w3, ((0, 0), (0, 0), (0, pad)))
        b3 = jnp.pad(b3, ((0, 0), (0, 0), (0, pad)))

    if compute_dtype is not None:
        w3 = w3.astype(compute_dtype)
    b3 = b3.astype(jnp.float32)
    return w3, b3, d_out_padded


def maxout(x, w3, b3, d_out, pool_size, *, tile_rows=256, max_tile_cols=512,
           compute_dtype=None, vmem_limit_bytes=None, out_dtype=None):
    """x: (..., d_in); w3/b3 from prepare_maxout_params. Returns (..., d_out)."""
    d_in = x.shape[-1]
    d_out_padded = w3.shape[-1]
    orig_shape = x.shape
    out_dtype = out_dtype or x.dtype

    xf = x.reshape(-1, d_in)
    if compute_dtype is not None:
        xf = xf.astype(compute_dtype)
    n_rows = xf.shape[0]

    # Row tiling: big MXU-friendly tiles; shrink for tiny inputs; pad remainder.
    tr = min(tile_rows, _round_up(n_rows, 8))
    n_pad = _round_up(n_rows, tr)
    if n_pad != n_rows:
        xf = jnp.pad(xf, ((0, n_pad - n_rows), (0, 0)))

    # Column tiling: largest 128-multiple <= max_tile_cols dividing d_out_padded.
    tc = 128
    for cand in range((max_tile_cols // 128) * 128, 127, -128):
        if d_out_padded % cand == 0:
            tc = cand
            break

    if vmem_limit_bytes is None:
        try:
            cap = pltpu.get_tpu_info().vmem_capacity_bytes
        except Exception:
            cap = 64 * 1024 * 1024
        vmem_limit_bytes = max(48 * 1024 * 1024, int(cap * 0.8))

    grid = (n_pad // tr, d_out_padded // tc, pool_size)

    out = pl.pallas_call(
        maxout_kernel,
        out_shape=jax.ShapeDtypeStruct((n_pad, d_out_padded), out_dtype),
        grid_spec=pltpu.PrefetchScalarGridSpec(
            num_scalar_prefetch=0,
            grid=grid,
            in_specs=[
                # x tile: invariant over (j, p) -> fetched once per row tile.
                pl.BlockSpec((tr, d_in), lambda i, j, p: (i, 0)),
                # weight slab for pool p / column tile j (leading dim squeezed).
                pl.BlockSpec((None, d_in, tc), lambda i, j, p: (p, 0, j)),
                pl.BlockSpec((None, 1, tc), lambda i, j, p: (p, 0, j)),
            ],
            out_specs=pl.BlockSpec((tr, tc), lambda i, j, p: (i, j)),
            scratch_shapes=[pltpu.VMEM((tr, tc), jnp.float32)],
        ),
        compiler_params=pltpu.CompilerParams(
            dimension_semantics=("parallel", "parallel", "arbitrary"),
            vmem_limit_bytes=int(vmem_limit_bytes),
        ),
    )(xf, w3, b3)

    out = out[:n_rows, :d_out]
    return out.reshape(*orig_shape[:-1], d_out)


if __name__ == "__main__":
    # Small shapes consistent with the module's forward.
    batch, seq = 2, 8
    d_in, d_out, pool_size = 32, 16, 4

    key = jax.random.PRNGKey(0)
    kx, kw = jax.random.split(key)

    x = jax.random.normal(kx, (batch, seq, d_in), dtype=jnp.float32)

    # XavierLinear: xavier_uniform_ weight (d_out*pool_size, d_in), bias zeroed.
    fan_out, fan_in = d_out * pool_size, d_in
    bound = (6.0 / (fan_in + fan_out)) ** 0.5
    weight = jax.random.uniform(kw, (fan_out, fan_in), dtype=jnp.float32,
                                minval=-bound, maxval=bound)
    bias = jnp.zeros((fan_out,), dtype=jnp.float32)

    # Parameter reorder/pad happens ONCE here (init time), not per forward call.
    w3, b3, _ = prepare_maxout_params(weight, bias, d_out, pool_size)

    out = maxout(x, w3, b3, d_out, pool_size)
    out = jax.block_until_ready(out)

    # Pure-JAX reference (mirrors the PyTorch forward exactly).
    lin = x.reshape(-1, d_in) @ weight.T + bias
    ref = lin.reshape(-1, d_out, pool_size).max(axis=-1)
    ref = ref.reshape(batch, seq, d_out)

    assert out.shape == (batch, seq, d_out)
    assert jnp.allclose(out, ref, atol=1e-5, rtol=1e-5)
    print("KERNEL_OK")
</pallas_src>

<mosaic_0001>
module attributes {stable_mosaic.version = 11 : i64} {
  func.func @maxout_kernel(%arg0: i32, %arg1: i32, %arg2: i32, %arg3: memref<16x32xf32, #tpu.memory_space<vmem>>, %arg4: memref<1x32x128xf32, #tpu.memory_space<vmem>>, %arg5: memref<1x1x128xf32, #tpu.memory_space<vmem>>, %arg6: memref<16x128xf32, #tpu.memory_space<vmem>>, %arg7: memref<16x128xf32, #tpu.memory_space<vmem>>) attributes {dimension_semantics = [#tpu.dimension_semantics<parallel>, #tpu.dimension_semantics<parallel>, #tpu.dimension_semantics<arbitrary>], iteration_bounds = array<i64: 1, 1, 4>, scalar_prefetch = 0 : i64, scratch_operands = 1 : i64, tpu.core_type = #tpu.core_type<tc>, window_params = [{transform_indices = @transform_0, window_bounds = array<i64: 16, 32>}, {transform_indices = @transform_1, window_bounds = array<i64: 1, 32, 128>}, {transform_indices = @transform_2, window_bounds = array<i64: 1, 1, 128>}, {transform_indices = @transform_3, window_bounds = array<i64: 16, 128>}]} {
    %c0 = arith.constant 0 : index
    %c0_0 = arith.constant 0 : index
    %0 = vector.load %arg3[%c0, %c0_0] : memref<16x32xf32, #tpu.memory_space<vmem>>, vector<16x32xf32>
    %c0_1 = arith.constant 0 : index
    %c0_2 = arith.constant 0 : index
    %c0_3 = arith.constant 0 : index
    %1 = vector.load %arg4[%c0_1, %c0_2, %c0_3] : memref<1x32x128xf32, #tpu.memory_space<vmem>>, vector<1x32x128xf32>
    %2 = vector.shape_cast %1 : vector<1x32x128xf32> to vector<32x128xf32>
    %cst = arith.constant dense<0.000000e+00> : vector<16x128xf32>
    %3 = tpu.matmul %0, %2, %cst {dimension_numbers = #tpu.dot_dimension_numbers<[1], [0], [0], [1], [0, 0, 1, 1], [], []>} : vector<16x32xf32>, vector<32x128xf32>, vector<16x128xf32> -> vector<16x128xf32>
    %c0_4 = arith.constant 0 : index
    %c0_5 = arith.constant 0 : index
    %c0_6 = arith.constant 0 : index
    %4 = vector.load %arg5[%c0_4, %c0_5, %c0_6] : memref<1x1x128xf32, #tpu.memory_space<vmem>>, vector<1x1x128xf32>
    %5 = vector.shape_cast %4 : vector<1x1x128xf32> to vector<1x128xf32>
    %6 = vector.broadcast %5 : vector<1x128xf32> to vector<16x128xf32>
    %7 = arith.addf %3, %6 : vector<16x128xf32>
    %c0_i32 = arith.constant 0 : i32
    %8 = arith.cmpi eq, %arg2, %c0_i32 : i32
    %9 = arith.extui %8 : i1 to i32
    %c0_i32_7 = arith.constant 0 : i32
    %10 = arith.cmpi ne, %9, %c0_i32_7 : i32
    scf.if %10 {
      %c0_11 = arith.constant 0 : index
      %c0_12 = arith.constant 0 : index
      %17 = vector.load %arg7[%c0_11, %c0_12] : memref<16x128xf32, #tpu.memory_space<vmem>>, vector<16x128xf32>
      tpu.vector_store %arg7[%c0_11, %c0_12], %7 {strides = array<i32>} : memref<16x128xf32, #tpu.memory_space<vmem>>, vector<16x128xf32>,
    } else {
    }
    %c0_i32_8 = arith.constant 0 : i32
    %11 = arith.cmpi sgt, %arg2, %c0_i32_8 : i32
    %12 = arith.extui %11 : i1 to i32
    %c0_i32_9 = arith.constant 0 : i32
    %13 = arith.cmpi ne, %12, %c0_i32_9 : i32
    scf.if %13 {
      %c0_11 = arith.constant 0 : index
      %c0_12 = arith.constant 0 : index
      %17 = vector.load %arg7[%c0_11, %c0_12] : memref<16x128xf32, #tpu.memory_space<vmem>>, vector<16x128xf32>
      %18 = arith.maximumf %17, %7 : vector<16x128xf32>
      %c0_13 = arith.constant 0 : index
      %c0_14 = arith.constant 0 : index
      %19 = vector.load %arg7[%c0_13, %c0_14] : memref<16x128xf32, #tpu.memory_space<vmem>>, vector<16x128xf32>
      tpu.vector_store %arg7[%c0_13, %c0_14], %18 {strides = array<i32>} : memref<16x128xf32, #tpu.memory_space<vmem>>, vector<16x128xf32>,
    } else {
    }
    %c3_i32 = arith.constant 3 : i32
    %14 = arith.cmpi eq, %arg2, %c3_i32 : i32
    %15 = arith.extui %14 : i1 to i32
    %c0_i32_10 = arith.constant 0 : i32
    %16 = arith.cmpi ne, %15, %c0_i32_10 : i32
    scf.if %16 {
      %c0_11 = arith.constant 0 : index
      %c0_12 = arith.constant 0 : index
      %17 = vector.load %arg7[%c0_11, %c0_12] : memref<16x128xf32, #tpu.memory_space<vmem>>, vector<16x128xf32>
      %c0_13 = arith.constant 0 : index
      %c0_14 = arith.constant 0 : index
      %18 = vector.load %arg6[%c0_13, %c0_14] : memref<16x128xf32, #tpu.memory_space<vmem>>, vector<16x128xf32>
      tpu.vector_store %arg6[%c0_13, %c0_14], %17 {strides = array<i32>} : memref<16x128xf32, #tpu.memory_space<vmem>>, vector<16x128xf32>,
    } else {
    }
    return
  }
  func.func @transform_0(%arg0: i32, %arg1: i32, %arg2: i32) -> (i32, i32) {
    %c0_i32 = arith.constant 0 : i32
    %c0_i32_0 = arith.constant 0 : i32
    return %arg0, %c0_i32 : i32, i32
  }
  func.func @transform_1(%arg0: i32, %arg1: i32, %arg2: i32) -> (i32, i32, i32) {
    %c0_i32 = arith.constant 0 : i32
    %c0_i32_0 = arith.constant 0 : i32
    return %arg2, %c0_i32, %arg1 : i32, i32, i32
  }
  func.func @transform_2(%arg0: i32, %arg1: i32, %arg2: i32) -> (i32, i32, i32) {
    %c0_i32 = arith.constant 0 : i32
    %c0_i32_0 = arith.constant 0 : i32
    return %arg2, %c0_i32, %arg1 : i32, i32, i32
  }
  func.func @transform_3(%arg0: i32, %arg1: i32, %arg2: i32) -> (i32, i32) {
    %c0_i32 = arith.constant 0 : i32
    return %arg0, %arg1 : i32, i32
  }
}

</mosaic_0001>

<llo_original>
// kernel: tpu_custom_call.1
$region0: #{tpu_custom_call.1}
  #allocation0 [shape = 'u32[]', space=smem, size = 0x4, offset = 0x4, fixed_abs, tag = 'smem constant byte address 0x4 - core index']
  #allocation1 [shape = 'u32[144,128]{1,0:T(1,128)}', space=vmem, size = 0x12000, scoped, tag = 'internal scratch']
  #allocation2 [shape = 'f32[16,128]{1,0:T(8,128)}', space=vmem, size = 0x2000, scoped, tag = 'scratch operand']
  %s0 = inlined_call_operand.hbm [shape: f32[16,32], index: 0, kind: input, shape index: {}]
  %s1 = inlined_call_operand.hbm [shape: f32[4,32,128], index: 1, kind: input, shape index: {}]
  %s2 = inlined_call_operand.hbm [shape: f32[4,1,128], index: 2, kind: input, shape index: {}]
  %s3 = inlined_call_operand.hbm [shape: f32[16,128], index: 3, kind: output, shape index: {}]
  %s4 = sld [smem:[#allocation0]]
  $region69: #{tpu_custom_call.1} parent=0
    _
  %s6 = ssub.s32 1, %s4
  %s7 = scalar_select 0, %s6, %s4
  $region1: #{tpu_custom_call.1} parent=0
    #allocation3 [shape = 'u8[8192]{0}', space=vmem, size = 0x2000, scoped, tag = 'input window, operand 0, single buffered']
    #allocation4 [shape = 's32[2]{0}', space=sflag, size = 0x8, scoped, tag = 'scoped memory for tpu_custom_call.1']
    #allocation5 [shape = 's32[2]{0}', space=sflag, size = 0x8, scoped, tag = 'scoped memory for tpu_custom_call.1']
    #allocation6 [shape = 'u8[32768]{0}', space=vmem, size = 0x8000, scoped, tag = 'input window, operand 1']
    #allocation7 [shape = 's32[2]{0}', space=sflag, size = 0x8, scoped, tag = 'scoped memory for tpu_custom_call.1']
    #allocation8 [shape = 'u8[1024]{0}', space=vmem, size = 0x400, scoped, tag = 'input window, operand 2']
    #allocation9 [shape = 'u8[8192]{0}', space=vmem, size = 0x2000, scoped, tag = 'output window, operand 0, single buffered']
    %8 = vsyncpa [#allocation4], 0
    %9 = vsyncpa [#allocation7], 0
    %s10 = scalar_lea.sflag [#allocation7], 1
    %11 = vsyncpa %s10, 0
    %12 = vsyncpa [#allocation5], 0
    loop: start=0, step=1, limit=6
    $region2: #{tpu_custom_call.1} parent=1 // loop_pre_header
      _
    $region3: #{tpu_custom_call.1} parent=1 // loop_header
      %s14 = sphi 0, %s18
      %p15 = scmp.ge.s32.totalorder %s14, 6
      %s21 = sphi 0, %s40
      %s22 = sphi 0, %s36
      %s23 = sphi 0, %s32
      %s24 = sphi 0, %s21
      %s25 = sphi 0, %s22
      %s26 = sphi 0, %s23
      %s27 = sphi 0, %s24
      %s28 = sphi 0, %s25
      %s29 = sphi 0, %s26
      %s43 = sphi 0, %s45
      %s46 = sphi 0, %s43
      %s47 = sphi 0, %s46
      %s63 = sphi 0, %s47
      %s71 = sphi 0, %s73
      %s74 = sphi 0, %s71
      %s75 = sphi 0, %s74
      %s91 = sphi 0, %s75
      %s99 = sphi 0, %s101
      %s102 = sphi 0, %s99
      %s103 = sphi 0, %s102
      %s119 = sphi 0, %s103
      %s127 = sphi 0, %s129
      %s130 = sphi 0, %s127
      %s131 = sphi 0, %s130
      %s147 = sphi 0, %s131
    $region4: #{tpu_custom_call.1} parent=1 // loop_header_branch
      %17 = sbr.rel (%p15) target = $region8
    $region5: #{tpu_custom_call.1} parent=1 // loop_body
      %s19 = ssub.s32 %s14, 1
      %s20 = ssub.s32 %s14, 2
      %s30 = sadd.s32 1, %s23
      %p31 = scmp.ge.s32.totalorder %s30, 4
      %s32 = scalar_select %p31, 0, %s30
      %s33 = sadd.s32 1, %s22
      %s34 = scalar_select %p31, %s33, %s22
      %p35 = scmp.ge.s32.totalorder %s34, 1
      %s36 = scalar_select %p35, 0, %s34
      %s37 = sadd.s32 1, %s21
      %s38 = scalar_select %p35, %s37, %s21
      %p39 = scmp.ge.s32.totalorder %s38, 1
      %s40 = scalar_select %p39, 0, %s38
      %s41 = ssub.s32 %s21, %s40
      %p42 = scmp.eq.s32.totalorder %s41, 0
      %s44 = sadd.s32 %s43, 1
      %s45 = scalar_select %p42, %s43, %s44
      %p48 = pneg %p42
      %p49 = scmp.eq.s32.totalorder %s14, 3
      %p50 = por %p48, %p49
      %p51 = scmp.ne.s32.totalorder %s43, %s46
      %p52 = scmp.eq.s32.totalorder %s14, 0
      %p53 = por %p51, %p52
      %p54 = scmp.ne.s32.totalorder %s43, %s46
      %p55 = scmp.eq.s32.totalorder %s19, 3
      %p56 = por %p54, %p55
      %p57 = scmp.ne.s32.totalorder %s46, %s47
      %p58 = scmp.eq.s32.totalorder %s19, 0
      %p59 = por %p57, %p58
      %p60 = scmp.ne.s32.totalorder %s46, %s47
      %p61 = scmp.eq.s32.totalorder %s20, 3
      %p62 = por %p60, %p61
      %p64 = scmp.ne.s32.totalorder %s47, %s63
      %p65 = scmp.eq.s32.totalorder %s20, 0
      %p66 = por %p64, %p65
      %s67 = ssub.s32 %s23, %s32
      %s68 = ssub.s32 %s22, %s36
      %s69 = sor.u32 %s67, %s68
      %p70 = scmp.eq.s32.totalorder %s69, 0
      %s72 = sadd.s32 %s71, 1
      %s73 = scalar_select %p70, %s71, %s72
      %p76 = pneg %p70
      %p77 = scmp.eq.s32.totalorder %s14, 3
      %p78 = por %p76, %p77
      %p79 = scmp.ne.s32.totalorder %s71, %s74
      %p80 = scmp.eq.s32.totalorder %s14, 0
      %p81 = por %p79, %p80
      %p82 = scmp.ne.s32.totalorder %s71, %s74
      %p83 = scmp.eq.s32.totalorder %s19, 3
      %p84 = por %p82, %p83
      %p85 = scmp.ne.s32.totalorder %s74, %s75
      %p86 = scmp.eq.s32.totalorder %s19, 0
      %p87 = por %p85, %p86
      %p88 = scmp.ne.s32.totalorder %s74, %s75
      %p89 = scmp.eq.s32.totalorder %s20, 3
      %p90 = por %p88, %p89
      %p92 = scmp.ne.s32.totalorder %s75, %s91
      %p93 = scmp.eq.s32.totalorder %s20, 0
      %p94 = por %p92, %p93
      %s95 = ssub.s32 %s23, %s32
      %s96 = ssub.s32 %s22, %s36
      %s97 = sor.u32 %s95, %s96
      %p98 = scmp.eq.s32.totalorder %s97, 0
      %s100 = sadd.s32 %s99, 1
      %s101 = scalar_select %p98, %s99, %s100
      %p104 = pneg %p98
      %p105 = scmp.eq.s32.totalorder %s14, 3
      %p106 = por %p104, %p105
      %p107 = scmp.ne.s32.totalorder %s99, %s102
      %p108 = scmp.eq.s32.totalorder %s14, 0
      %p109 = por %p107, %p108
      %p110 = scmp.ne.s32.totalorder %s99, %s102
      %p111 = scmp.eq.s32.totalorder %s19, 3
      %p112 = por %p110, %p111
      %p113 = scmp.ne.s32.totalorder %s102, %s103
      %p114 = scmp.eq.s32.totalorder %s19, 0
      %p115 = por %p113, %p114
      %p116 = scmp.ne.s32.totalorder %s102, %s103
      %p117 = scmp.eq.s32.totalorder %s20, 3
      %p118 = por %p116, %p117
      %p120 = scmp.ne.s32.totalorder %s103, %s119
      %p121 = scmp.eq.s32.totalorder %s20, 0
      %p122 = por %p120, %p121
      %s123 = ssub.s32 %s21, %s40
      %s124 = ssub.s32 %s22, %s36
      %s125 = sor.u32 %s123, %s124
      %p126 = scmp.eq.s32.totalorder %s125, 0
      %s128 = sadd.s32 %s127, 1
      %s129 = scalar_select %p126, %s127, %s128
      %p132 = pneg %p126
      %p133 = scmp.eq.s32.totalorder %s14, 3
      %p134 = por %p132, %p133
      %p135 = scmp.ne.s32.totalorder %s127, %s130
      %p136 = scmp.eq.s32.totalorder %s14, 0
      %p137 = por %p135, %p136
      %p138 = scmp.ne.s32.totalorder %s127, %s130
      %p139 = scmp.eq.s32.totalorder %s19, 3
      %p140 = por %p138, %p139
      %p141 = scmp.ne.s32.totalorder %s130, %s131
      %p142 = scmp.eq.s32.totalorder %s19, 0
      %p143 = por %p141, %p142
      %p144 = scmp.ne.s32.totalorder %s130, %s131
      %p145 = scmp.eq.s32.totalorder %s20, 3
      %p146 = por %p144, %p145
      %p148 = scmp.ne.s32.totalorder %s131, %s147
      %p149 = scmp.eq.s32.totalorder %s20, 0
      %p150 = por %p148, %p149
      %p151 = scmp.le.s32.totalorder 1, %s14
      %p152 = scmp.lt.s32.totalorder %s14, 5
      %p153 = pnand %p151, %p152
      %p154 = pneg %p153
      // Predicated region
      $region9: #{tpu_custom_call.1} parent=5 // pred_check
        _
      $region10: #{tpu_custom_call.1} parent=5 // pred_check_branch
        %156 = sbr.rel (%p153) target = $region12
      $region11: #{tpu_custom_call.1} parent=5 // pred_region
        %s157 = ssub.s32 %s14, 1
        // Predicated region
        $region13: #{tpu_custom_call.1} parent=11 // pred_check
          %p158 = pneg %p59
        $region14: #{tpu_custom_call.1} parent=11 // pred_check_branch
          %160 = sbr.rel (%p158) target = $region16
        $region15: #{tpu_custom_call.1} parent=11 // pred_region
          %s161 = smul.u32 2, %s24
          %s163 = ssub.s32 256, 256
          %164 = vsyncadd [#allocation4], %s163
          %s165 = smul.addr %s161, 128
          %s166 = scalar_lea.hbm %s0, %s165
          %s167 = sshll.u32 [#allocation3], 4
          %s168 = int_to_ptr.vmem [resolvable:$true] %s167
          %173 = dma.hbm_to_vmem [thread:$0]  %s166, 256, %s168, [#allocation4], 128, 128, 8
        $region16: #{tpu_custom_call.1} parent=11 // pred_fallthru
          _
      $region12: #{tpu_custom_call.1} parent=5 // pred_fallthru
        _
      %p174 = scmp.lt.s32.totalorder %s14, 4
      // Predicated region
      $region17: #{tpu_custom_call.1} parent=5 // pred_check
        %p175 = pneg %p174
      $region18: #{tpu_custom_call.1} parent=5 // pred_check_branch
        %177 = sbr.rel (%p175) target = $region20
      $region19: #{tpu_custom_call.1} parent=5 // pred_region
        // Predicated region
        $region21: #{tpu_custom_call.1} parent=19 // pred_check
          %p178 = pneg %p81
        $region22: #{tpu_custom_call.1} parent=19 // pred_check_branch
          %180 = sbr.rel (%p178) target = $region24
        $region23: #{tpu_custom_call.1} parent=19 // pred_region
          %s181 = sand.u32 %s14, 1
          %s182 = scalar_lea.sflag [#allocation7], %s181
          %s183 = sand.u32 %s71, 1
          %s184 = smul.addr %s183, 32
          %s185 = scalar_lea.vmem [#allocation6], %s184
          %s187 = ssub.s32 512, 512
          %188 = vsyncadd %s182, %s187
          %s189 = smul.addr %s23, 4
          %s190 = sadd.s32 %s22, %s189
          %s191 = smul.addr %s190, 128
          %s192 = scalar_lea.hbm %s1, %s191
          %s193 = sshll.u32 %s185, 4
          %s194 = int_to_ptr.vmem [resolvable:$true] %s193
          %199 = dma.hbm_to_vmem [thread:$0]  %s192, 512, %s194, %s182, 128, 128, 8
        $region24: #{tpu_custom_call.1} parent=19 // pred_fallthru
          _
        // Predicated region
        $region25: #{tpu_custom_call.1} parent=19 // pred_check
          %p200 = pneg %p109
        $region26: #{tpu_custom_call.1} parent=19 // pred_check_branch
          %202 = sbr.rel (%p200) target = $region28
        $region27: #{tpu_custom_call.1} parent=19 // pred_region
          %s203 = sand.u32 %s14, 1
          %s204 = scalar_lea.sflag [#allocation7], %s203
          %s205 = sand.u32 %s99, 1
          %s206 = scalar_lea.vmem [#allocation8], %s205
          %s208 = ssub.s32 16, 16
          %209 = vsyncadd %s204, %s208
          %s210 = sadd.s32 %s22, %s23
          %s211 = smul.addr %s210, 16
          %s212 = scalar_lea.hbm %s2, %s211
          %s214 = sshll.u32 %s206, 4
          %s215 = int_to_ptr.vmem [resolvable:$true] %s214
          %217 = dma.hbm_to_vmem [thread:$0]  %s212, 16, %s215, %s204
        $region28: #{tpu_custom_call.1} parent=19 // pred_fallthru
          _
      $region20: #{tpu_custom_call.1} parent=5 // pred_fallthru
        _
      %p218 = scmp.le.s32.totalorder 1, %s14
      %p219 = scmp.lt.s32.totalorder %s14, 5
      %p220 = pnand %p218, %p219
      %p221 = pneg %p220
      // Predicated region
      $region29: #{tpu_custom_call.1} parent=5 // pred_check
        _
      $region30: #{tpu_custom_call.1} parent=5 // pred_check_branch
        %223 = sbr.rel (%p220) target = $region32
      $region31: #{tpu_custom_call.1} parent=5 // pred_region
        %s224 = ssub.s32 %s14, 1
        // Predicated region
        $region33: #{tpu_custom_call.1} parent=31 // pred_check
          %p225 = pneg %p59
        $region34: #{tpu_custom_call.1} parent=31 // pred_check_branch
          %227 = sbr.rel (%p225) target = $region36
        $region35: #{tpu_custom_call.1} parent=31 // pred_region
          %228 = dma.done [#allocation4], 256
        $region36: #{tpu_custom_call.1} parent=31 // pred_fallthru
          _
        %s229 = sand.u32 %s19, 1
        %s230 = scalar_lea.sflag [#allocation7], %s229
        %s231 = sand.u32 %s74, 1
        %s232 = smul.addr %s231, 32
        %s233 = scalar_lea.vmem [#allocation6], %s232
        // Predicated region
        $region37: #{tpu_custom_call.1} parent=31 // pred_check
          %p234 = pneg %p87
        $region38: #{tpu_custom_call.1} parent=31 // pred_check_branch
          %236 = sbr.rel (%p234) target = $region40
        $region39: #{tpu_custom_call.1} parent=31 // pred_region
          %237 = dma.done %s230, 512
        $region40: #{tpu_custom_call.1} parent=31 // pred_fallthru
          _
        %s238 = sand.u32 %s19, 1
        %s239 = scalar_lea.sflag [#allocation7], %s238
        %s240 = sand.u32 %s102, 1
        %s241 = scalar_lea.vmem [#allocation8], %s240
        // Predicated region
        $region41: #{tpu_custom_call.1} parent=31 // pred_check
          %p242 = pneg %p115
        $region42: #{tpu_custom_call.1} parent=31 // pred_check_branch
          %244 = sbr.rel (%p242) target = $region44
        $region43: #{tpu_custom_call.1} parent=31 // pred_region
          %245 = dma.done %s239, 16
        $region44: #{tpu_custom_call.1} parent=31 // pred_fallthru
          _
        %p246 = pneg %p59
        %p247 = pneg %p56
        %s248 = sand.u32 %s19, 1
        %s249 = scalar_lea.sflag [#allocation7], %s248
        %s250 = sand.u32 %s74, 1
        %s251 = smul.addr %s250, 32
        %s252 = scalar_lea.vmem [#allocation6], %s251
        %p253 = pneg %p87
        %p254 = pneg %p84
        %s255 = sand.u32 %s19, 1
        %s256 = scalar_lea.sflag [#allocation7], %s255
        %s257 = sand.u32 %s102, 1
        %s258 = scalar_lea.vmem [#allocation8], %s257
        %p259 = pneg %p115
        %p260 = pneg %p112
        %p261 = pneg %p143
        %p262 = pneg %p140
        %s263 = smul.u32 2, %s24
        %s264 = smul.u32 2, %s24
        %v265 = vld [vmem:[#allocation3] sm:$0xff]
        %v266 = vld [vmem:[#allocation3 + $0x8] sm:$0xff]
        %v267 = vld [vmem:[%s233] sm:$0xff]
        %v268 = vld [vmem:[%s233 + $0x8] sm:$0xff]
        %v269 = vld [vmem:[%s233 + $0x10] sm:$0xff]
        %v270 = vld [vmem:[%s233 + $0x18] sm:$0xff]
        %v271 = vld [vmem:[%s241] sm:$0x1]
        %v273 = vlaneseq
        %v274 = vshrl.u32 %v273, 7
        %v275 = vsub.s32 0, %v274
        %v276 = vrot.slane %v271, %v275
        %vm278 = vcmask 261120
        %v280 = vsel %vm278, %v265, 0
        %v283 = vsel %vm278, %v266, 0
        %285 = vmatprep.subr.mxu0 0.0
        %286 = vmatpush1.msra.mxu0 0.0
        %287 = vmatprep.subr.mxu0 0.0
        %288 = vmatpush1.msra.mxu0 0.0
        %289 = vmatprep.subr.mxu0 0.0
        %290 = vmatpush1.msra.mxu0 0.0
        %291 = vmatprep.subr.mxu0 0.0
        %292 = vmatpush1.msra.mxu0 0.0
        %293 = vmatprep.subr.mxu0 0.0
        %294 = vmatpush1.msra.mxu0 0.0
        %295 = vmatprep.subr.mxu0 0.0
        %296 = vmatpush1.msra.mxu0 0.0
        %297 = vmatprep.subr.mxu0 0.0
        %298 = vmatpush1.msra.mxu0 0.0
        %299 = vmatprep.subr.mxu0 0.0
        %300 = vmatpush1.msra.mxu0 0.0
        %301 = vmatprep.subr.mxu0 0.0
        %302 = vmatpush1.msra.mxu0 0.0
        %303 = vmatprep.subr.mxu0 0.0
        %304 = vmatpush1.msra.mxu0 0.0
        %305 = vmatprep.subr.mxu0 0.0
        %306 = vmatpush1.msra.mxu0 0.0
        %307 = vmatprep.subr.mxu0 0.0
        %308 = vmatpush1.msra.mxu0 0.0
        %309 = vmatprep.subr.mxu0 0.0
        %310 = vmatpush1.msra.mxu0 %v270
        %311 = vmatprep.subr.mxu0 0.0
        %312 = vmatpush1.msra.mxu0 %v269
        %313 = vmatprep.subr.mxu0 0.0
        %314 = vmatpush1.msra.mxu0 %v268
        %315 = vmatprep.subr.mxu0 0.0
        %316 = vmatpush1.msra.mxu0 %v267
        %317 = vmatprep.subr.mxu0 0.0
        %318 = vmatpush2.msra.mxu0 0.0
        %319 = vmatprep.subr.mxu0 0.0
        %320 = vmatpush2.msra.mxu0 0.0
        %321 = vmatprep.subr.mxu0 0.0
        %322 = vmatpush2.msra.mxu0 0.0
        %323 = vmatprep.subr.mxu0 0.0
        %324 = vmatpush2.msra.mxu0 0.0
        %325 = vmatprep.subr.mxu0 0.0
        %326 = vmatpush2.msra.mxu0 0.0
        %327 = vmatprep.subr.mxu0 0.0
        %328 = vmatpush2.msra.mxu0 0.0
        %329 = vmatprep.subr.mxu0 0.0
        %330 = vmatpush2.msra.mxu0 0.0
        %331 = vmatprep.subr.mxu0 0.0
        %332 = vmatpush2.msra.mxu0 0.0
        %333 = vmatprep.subr.mxu0 0.0
        %334 = vmatpush2.msra.mxu0 0.0
        %335 = vmatprep.subr.mxu0 0.0
        %336 = vmatpush2.msra.mxu0 0.0
        %337 = vmatprep.subr.mxu0 0.0
        %338 = vmatpush2.msra.mxu0 0.0
        %339 = vmatprep.subr.mxu0 0.0
        %340 = vmatpush2.msra.mxu0 0.0
        %341 = vmatprep.subr.mxu0 0.0
        %342 = vmatpush2.msra.mxu0 0.0
        %343 = vmatprep.subr.mxu0 0.0
        %344 = vmatpush2.msra.mxu0 0.0
        %345 = vmatprep.subr.mxu0 0.0
        %346 = vmatpush2.msra.mxu0 0.0
        %347 = vmatprep.subr.mxu0 0.0
        %348 = vmatpush2.msra.mxu0 0.0
        %349 = vmatprep.mubr.f32.mxu0 0.0
        %350 = vmatmul.mubr.f32.gmra.mxu0 %v280
        %v351 = vpop.f32.mrf.mxu0
        %v352 = vadd.f32 %v276, %v351
        %v353 = vpop.f32.mrf.mxu0
        %354 = vmatprep.mubr.f32.mxu0 0.0
        %355 = vmatmul.mubr.f32.gmra.mxu0 %v283
        %v356 = vpop.f32.mrf.mxu0
        %v357 = vadd.f32 %v276, %v356
        %v358 = vpop.f32.mrf.mxu0
        %359 = vdwg.mxu0
        %p360 = scmp.eq.s32.totalorder %s26, 0
        // Predicated region
        $region45: #{tpu_custom_call.1} parent=31 // pred_check
          %p361 = pneg %p360
        $region46: #{tpu_custom_call.1} parent=31 // pred_check_branch
          %363 = sbr.rel (%p361) target = $region48
        $region47: #{tpu_custom_call.1} parent=31 // pred_region
          %364 = vst [vmem:[#allocation2] sm:$0xff] %v352
          %365 = vst [vmem:[#allocation2 + $0x8] sm:$0xff] %v357
        $region48: #{tpu_custom_call.1} parent=31 // pred_fallthru
          _
        %p366 = scmp.gt.s32.totalorder %s26, 0
        // Predicated region
        $region49: #{tpu_custom_call.1} parent=31 // pred_check
          %p367 = pneg %p366
        $region50: #{tpu_custom_call.1} parent=31 // pred_check_branch
          %369 = sbr.rel (%p367) target = $region52
        $region51: #{tpu_custom_call.1} parent=31 // pred_region
          %v370 = vld [vmem:[#allocation2] sm:$0xff]
          %v371 = vld [vmem:[#allocation2 + $0x8] sm:$0xff]
          %v372 = vmax.f32 %v370, %v352
          %v373 = vmax.f32 %v371, %v357
          %374 = vst [vmem:[#allocation2] sm:$0xff] %v372
          %375 = vst [vmem:[#allocation2 + $0x8] sm:$0xff] %v373
        $region52: #{tpu_custom_call.1} parent=31 // pred_fallthru
          _
        %p376 = scmp.eq.s32.totalorder %s26, 3
        // Predicated region
        $region53: #{tpu_custom_call.1} parent=31 // pred_check
          %p377 = pneg %p376
        $region54: #{tpu_custom_call.1} parent=31 // pred_check_branch
          %379 = sbr.rel (%p377) target = $region56
        $region55: #{tpu_custom_call.1} parent=31 // pred_region
          %v380 = vld [vmem:[#allocation2] sm:$0xff]
          %v381 = vld [vmem:[#allocation2 + $0x8] sm:$0xff]
          %382 = vst [vmem:[#allocation9] sm:$0xff] %v380
          %383 = vst [vmem:[#allocation9 + $0x8] sm:$0xff] %v381
        $region56: #{tpu_custom_call.1} parent=31 // pred_fallthru
          _
        // Predicated region
        $region57: #{tpu_custom_call.1} parent=31 // pred_check
          %p384 = pneg %p140
        $region58: #{tpu_custom_call.1} parent=31 // pred_check_branch
          %386 = sbr.rel (%p384) target = $region60
        $region59: #{tpu_custom_call.1} parent=31 // pred_region
          %s387 = smul.u32 2, %s24
          %s389 = ssub.s32 256, 256
          %390 = vsyncadd [#allocation5], %s389
          %s391 = sadd.s32 %s25, %s387
          %s392 = smul.addr %s391, 128
          %s393 = scalar_lea.hbm %s3, %s392
          %s394 = sshll.u32 [#allocation9], 4
          %s395 = int_to_ptr.vmem [resolvable:$true] %s394
          %400 = dma.vmem_to_hbm [thread:$0]  %s395, 256, %s393, [#allocation5], 128, 128, 8
        $region60: #{tpu_custom_call.1} parent=31 // pred_fallthru
          _
        // Predicated region
        $region61: #{tpu_custom_call.1} parent=31 // pred_check
          %p401 = pneg %p140
        $region62: #{tpu_custom_call.1} parent=31 // pred_check_branch
          %403 = sbr.rel (%p401) target = $region64
        $region63: #{tpu_custom_call.1} parent=31 // pred_region
          %404 = dma.done [#allocation5], 256
        $region64: #{tpu_custom_call.1} parent=31 // pred_fallthru
          _
      $region32: #{tpu_custom_call.1} parent=5 // pred_fallthru
        _
      %p405 = scmp.le.s32.totalorder 2, %s14
      // Predicated region
      $region65: #{tpu_custom_call.1} parent=5 // pred_check
        %p406 = pneg %p405
      $region66: #{tpu_custom_call.1} parent=5 // pred_check_branch
        %408 = sbr.rel (%p406) target = $region68
      $region67: #{tpu_custom_call.1} parent=5 // pred_region
        %s409 = ssub.s32 %s14, 2
      $region68: #{tpu_custom_call.1} parent=5 // pred_fallthru
        _
    $region6: #{tpu_custom_call.1} parent=1 // loop_footer
      %s18 = sadd.s32 1, %s14
    $region7: #{tpu_custom_call.1} parent=1 // loop_footer_branch
      %13 = sbr.rel target = $region3
    $region8: #{tpu_custom_call.1} parent=1 // loop_exit
      _
    %410 = vsyncpa [#allocation4], 1
    %s411 = scalar_lea.sflag [#allocation4], 1
    %412 = vsyncpa %s411, 1
    %413 = vsyncpa [#allocation7], 1
    %s414 = scalar_lea.sflag [#allocation7], 1
    %415 = vsyncpa %s414, 1
    %416 = vsyncpa [#allocation5], 1
    %s417 = scalar_lea.sflag [#allocation5], 1
    %418 = vsyncpa %s417, 1

</llo_original>
